<compile_context>
chip_gen: v5e
topology: v5e:2x2
jax: 0.10.0
libtpu: 0.0.40
codegen_flags: <defaults>
</compile_context>

<pallas_src>
import functools

import jax
import jax.numpy as jnp
from jax.experimental import pallas as pl
from jax.experimental.pallas import tpu as pltpu


# Tile targets (multiples of 8 / 128).
_TM, _TN, _TK = 512, 512, 1024
# Keep the double-buffered working set under the smallest default scoped VMEM
# (16 MiB on v5e) with headroom -> portable across v5e / v6e / v7x without
# touching vmem_limit_bytes.
_VMEM_BUDGET = 12 * 1024 * 1024
# Weights whose padded footprint is at most this stay fully VMEM-resident.
_SMALL_W_BYTES = 4 * 1024 * 1024


def _round_up(x, m):
    return ((x + m - 1) // m) * m


# ---------------------------------------------------------------------------
# Kernels
# ---------------------------------------------------------------------------

def _linear_resident_w_kernel(x_ref, w_ref, b_ref, o_ref):
    """Whole (Kp, Np) weight + bias resident in VMEM; grid streams M-tiles."""
    o_ref[...] = (
        jnp.dot(x_ref[...], w_ref[...], preferred_element_type=jnp.float32)
        + b_ref[...]
    ).astype(o_ref.dtype)


def _linear_tiled_kernel(x_ref, w_ref, b_ref, o_ref):
    """(M, N, K) tiled matmul; accumulate directly in the f32 output block."""
    k = pl.program_id(2)
    partial = jnp.dot(x_ref[...], w_ref[...], preferred_element_type=jnp.float32)

    @pl.when(k == 0)
    def _():
        o_ref[...] = partial            # overwrite: no zero-fill step

    @pl.when(k > 0)
    def _():
        o_ref[...] += partial

    @pl.when(k == pl.num_programs(2) - 1)
    def _():
        o_ref[...] += b_ref[...]


# ---------------------------------------------------------------------------
# Tiling plan
# ---------------------------------------------------------------------------

def _plan_kn(K, N):
    """Static plan for the weight-side (K, N) dims. Independent of M."""
    Kp128 = _round_up(K, 128)
    Np128 = _round_up(N, 128)
    if Kp128 * Np128 * 4 <= _SMALL_W_BYTES:
        # Fast path: full weight resident in VMEM, single K/N block.
        return dict(mode="resident", Kp=Kp128, Np=Np128, tk=Kp128, tn=Np128)
    tk = _TK if Kp128 > _TK else Kp128
    tn = _TN if Np128 > _TN else Np128
    return dict(mode="tiled", Kp=_round_up(Kp128, tk), Np=_round_up(Np128, tn),
                tk=tk, tn=tn)


def _plan_m(M, kn):
    """Pick (tm, Mp) for the batch axis given the K/N plan."""
    Mp8 = _round_up(max(int(M), 1), 8)
    Kp, Np, tk, tn = kn["Kp"], kn["Np"], kn["tk"], kn["tn"]

    if kn["mode"] == "resident":
        def fits(tm):
            # x tile + whole W^T + out tile + bias row, double-buffered, f32.
            return 2 * 4 * (tm * Kp + Kp * Np + tm * Np + Np) <= _VMEM_BUDGET
    else:
        def fits(tm):
            return 2 * 4 * (tm * tk + tk * tn + tm * tn + tn) <= _VMEM_BUDGET

    tm = min(_TM, Mp8)
    while tm > 8 and not fits(tm):
        tm -= 8
    Mp = _round_up(Mp8, tm)

    # v7x has 2 TensorCores: make sure at least one "parallel" grid axis has
    # >= 2 blocks when shapes allow it, otherwise one core idles.
    n_blocks = Np // tn
    if Mp // tm < 2 and n_blocks < 2 and Mp >= 16 and (Mp // 2) % 8 == 0:
        tm = Mp // 2
    return tm, Mp


# ---------------------------------------------------------------------------
# Jitted 2-D forward
# ---------------------------------------------------------------------------

@functools.partial(
    jax.jit,
    static_argnames=("mode", "tm", "tn", "tk", "Mp", "Np", "Kp", "N"))
def _forward2d(x2d, w_t, b_row, *, mode, tm, tn, tk, Mp, Np, Kp, N):
    M, K = x2d.shape
    xp = x2d.astype(jnp.float32)
    if Mp != M or Kp != K:
        xp = jnp.pad(xp, ((0, Mp - M), (0, Kp - K)))

    if mode == "resident":
        grid = (Mp // tm,)
        out = pl.pallas_call(
            _linear_resident_w_kernel,
            out_shape=jax.ShapeDtypeStruct((Mp, Np), jnp.float32),
            grid_spec=pltpu.PrefetchScalarGridSpec(
                num_scalar_prefetch=0,
                grid=grid,
                in_specs=[
                    pl.BlockSpec((tm, Kp), lambda i: (i, 0)),   # x M-tile
                    pl.BlockSpec((Kp, Np), lambda i: (0, 0)),   # whole W^T (resident)
                    pl.BlockSpec((1, Np), lambda i: (0, 0)),    # whole bias (resident)
                ],
                out_specs=pl.BlockSpec((tm, Np), lambda i: (i, 0)),
            ),
            compiler_params=pltpu.CompilerParams(
                dimension_semantics=("parallel",)),
            cost_estimate=pl.CostEstimate(
                flops=2 * Mp * Np * Kp,
                bytes_accessed=4 * (Mp * Kp + Kp * Np + Mp * Np),
                transcendentals=0),
        )(xp, w_t, b_row)
    else:
        grid = (Mp // tm, Np // tn, Kp // tk)
        out = pl.pallas_call(
            _linear_tiled_kernel,
            out_shape=jax.ShapeDtypeStruct((Mp, Np), jnp.float32),
            grid_spec=pltpu.PrefetchScalarGridSpec(
                num_scalar_prefetch=0,
                grid=grid,
                in_specs=[
                    pl.BlockSpec((tm, tk), lambda i, j, k: (i, k)),   # x tile
                    pl.BlockSpec((tk, tn), lambda i, j, k: (k, j)),   # W^T tile
                    pl.BlockSpec((1, tn), lambda i, j, k: (0, j)),    # bias row
                ],
                out_specs=pl.BlockSpec((tm, tn), lambda i, j, k: (i, j)),
            ),
            compiler_params=pltpu.CompilerParams(
                dimension_semantics=("parallel", "parallel", "arbitrary")),
            cost_estimate=pl.CostEstimate(
                flops=2 * Mp * Np * Kp,
                bytes_accessed=4 * (Mp * Kp * (Np // tn)
                                    + Kp * Np * (Mp // tm)
                                    + Mp * Np),
                transcendentals=0),
        )(xp, w_t, b_row)

    if Mp != M or Np != N:
        out = out[:M, :N]
    return out


# ---------------------------------------------------------------------------
# Module wrapper (parameters prepped once, like nn.Linear weights)
# ---------------------------------------------------------------------------

class RvNNCoGCN:
    """Pallas-backed equivalent of RvNN_Co_GCN (a single nn.Linear)."""

    def __init__(self, weight, bias):
        weight = jnp.asarray(weight, jnp.float32)   # (output_dim, input_dim)
        bias = jnp.asarray(bias, jnp.float32)       # (output_dim,)
        self.output_dim, self.input_dim = weight.shape
        self._kn = _plan_kn(self.input_dim, self.output_dim)
        Kp, Np = self._kn["Kp"], self._kn["Np"]
        # Pad + transpose the parameters ONCE: W^T is stored (Kp, Np),
        # lane-dense, so the kernel never transposes and never re-pads.
        self._w_t = jnp.pad(
            weight, ((0, Np - self.output_dim), (0, Kp - self.input_dim))).T
        self._b_row = jnp.pad(bias, (0, Np - self.output_dim)).reshape(1, Np)

    def __call__(self, x):
        x = jnp.asarray(x)
        assert x.shape[-1] == self.input_dim, "input_dim mismatch"
        lead = x.shape[:-1]
        x2d = x.reshape(-1, self.input_dim)
        tm, Mp = _plan_m(x2d.shape[0], self._kn)
        out = _forward2d(
            x2d, self._w_t, self._b_row,
            mode=self._kn["mode"], tm=tm, tn=self._kn["tn"], tk=self._kn["tk"],
            Mp=Mp, Np=self._kn["Np"], Kp=self._kn["Kp"], N=self.output_dim)
        return out.reshape(lead + (self.output_dim,))


# ---------------------------------------------------------------------------
# Self-test
# ---------------------------------------------------------------------------

if __name__ == "__main__":
    key = jax.random.PRNGKey(0)

    def make_linear(k, input_dim, output_dim):
        kw, kb = jax.random.split(k)
        bound = 1.0 / (input_dim ** 0.5)
        w = jax.random.uniform(kw, (output_dim, input_dim), jnp.float32,
                               -bound, bound)
        b = jax.random.uniform(kb, (output_dim,), jnp.float32, -bound, bound)
        return w, b

    def reference(x, w, b):
        return jnp.matmul(x, w.T, precision=jax.lax.Precision.HIGHEST) + b

    k1, k2, k3, kx1, kx2, kx3 = jax.random.split(key, 6)

    # Case 1: small module-like shapes (batch=8, input_dim=32, output_dim=16).
    w1, b1 = make_linear(k1, 32, 16)
    mod1 = RvNNCoGCN(w1, b1)
    x1 = jax.random.normal(kx1, (8, 32), jnp.float32)
    o1 = jax.block_until_ready(mod1(x1))
    assert o1.shape == (8, 16)
    assert jnp.allclose(o1, reference(x1, w1, b1), atol=1e-5, rtol=1e-5), \
        "mismatch (resident path, aligned)"

    # Case 2: unaligned shapes + leading batch dims (Linear acts on last dim).
    w2, b2 = make_linear(k2, 40, 24)
    mod2 = RvNNCoGCN(w2, b2)
    x2 = jax.random.normal(kx2, (2, 5, 40), jnp.float32)
    o2 = jax.block_until_ready(mod2(x2))
    assert o2.shape == (2, 5, 24)
    assert jnp.allclose(o2, reference(x2, w2, b2), atol=1e-5, rtol=1e-5), \
        "mismatch (resident path, padded)"

    # Case 3: weight large enough to exercise the tiled K-accumulation path.
    w3, b3 = make_linear(k3, 2560, 512)
    mod3 = RvNNCoGCN(w3, b3)
    x3 = jax.random.normal(kx3, (64, 2560), jnp.float32)
    o3 = jax.block_until_ready(mod3(x3))
    assert o3.shape == (64, 512)
    assert jnp.allclose(o3, reference(x3, w3, b3), atol=1e-3, rtol=1e-3), \
        "mismatch (tiled path)"

    print("KERNEL_OK")
</pallas_src>

<mosaic_0001>
module attributes {stable_mosaic.version = 11 : i64} {
  func.func @_linear_resident_w_kernel(%arg0: i32, %arg1: memref<8x128xf32, #tpu.memory_space<vmem>>, %arg2: memref<128x128xf32, #tpu.memory_space<vmem>>, %arg3: memref<1x128xf32, #tpu.memory_space<vmem>>, %arg4: memref<8x128xf32, #tpu.memory_space<vmem>>) attributes {dimension_semantics = [#tpu.dimension_semantics<parallel>], iteration_bounds = array<i64: 1>, scalar_prefetch = 0 : i64, scratch_operands = 0 : i64, tpu.core_type = #tpu.core_type<tc>, window_params = [{transform_indices = @transform_0, window_bounds = array<i64: 8, 128>}, {pipeline_mode = #tpu.pipeline_mode<synchronous>, transform_indices = @transform_1, window_bounds = array<i64: 128, 128>}, {pipeline_mode = #tpu.pipeline_mode<synchronous>, transform_indices = @transform_2, window_bounds = array<i64: 1, 128>}, {transform_indices = @transform_3, window_bounds = array<i64: 8, 128>}]} {
    %c0 = arith.constant 0 : index
    %c0_0 = arith.constant 0 : index
    %0 = vector.load %arg1[%c0, %c0_0] : memref<8x128xf32, #tpu.memory_space<vmem>>, vector<8x128xf32>
    %c0_1 = arith.constant 0 : index
    %c0_2 = arith.constant 0 : index
    %1 = vector.load %arg2[%c0_1, %c0_2] : memref<128x128xf32, #tpu.memory_space<vmem>>, vector<128x128xf32>
    %cst = arith.constant dense<0.000000e+00> : vector<8x128xf32>
    %2 = tpu.matmul %0, %1, %cst {dimension_numbers = #tpu.dot_dimension_numbers<[1], [0], [0], [1], [0, 0, 1, 1], [], []>} : vector<8x128xf32>, vector<128x128xf32>, vector<8x128xf32> -> vector<8x128xf32>
    %c0_3 = arith.constant 0 : index
    %c0_4 = arith.constant 0 : index
    %3 = vector.load %arg3[%c0_3, %c0_4] : memref<1x128xf32, #tpu.memory_space<vmem>>, vector<1x128xf32>
    %4 = vector.broadcast %3 : vector<1x128xf32> to vector<8x128xf32>
    %5 = arith.addf %2, %4 : vector<8x128xf32>
    %c0_5 = arith.constant 0 : index
    %c0_6 = arith.constant 0 : index
    %6 = vector.load %arg4[%c0_5, %c0_6] : memref<8x128xf32, #tpu.memory_space<vmem>>, vector<8x128xf32>
    tpu.vector_store %arg4[%c0_5, %c0_6], %5 {strides = array<i32>} : memref<8x128xf32, #tpu.memory_space<vmem>>, vector<8x128xf32>,
    return
  }
  func.func @transform_0(%arg0: i32) -> (i32, i32) {
    %c0_i32 = arith.constant 0 : i32
    %c0_i32_0 = arith.constant 0 : i32
    return %arg0, %c0_i32 : i32, i32
  }
  func.func @transform_1(%arg0: i32) -> (i32, i32) {
    %c0_i32 = arith.constant 0 : i32
    %c0_i32_0 = arith.constant 0 : i32
    %c0_i32_1 = arith.constant 0 : i32
    return %c0_i32, %c0_i32_0 : i32, i32
  }
  func.func @transform_2(%arg0: i32) -> (i32, i32) {
    %c0_i32 = arith.constant 0 : i32
    %c0_i32_0 = arith.constant 0 : i32
    %c0_i32_1 = arith.constant 0 : i32
    return %c0_i32, %c0_i32_0 : i32, i32
  }
  func.func @transform_3(%arg0: i32) -> (i32, i32) {
    %c0_i32 = arith.constant 0 : i32
    %c0_i32_0 = arith.constant 0 : i32
    return %arg0, %c0_i32 : i32, i32
  }
}

</mosaic_0001>

<llo_original>
// kernel: _forward2d.1
$region0: #{_forward2d.1}
  #allocation0 [shape = 'u32[]', space=smem, size = 0x4, offset = 0x4, fixed_abs, tag = 'smem constant byte address 0x4 - core index']
  #allocation1 [shape = 'u32[72,128]{1,0:T(1,128)}', space=vmem, size = 0x9000, scoped, tag = 'internal scratch']
  %s0 = inlined_call_operand.vmem [shape: f32[8,128], index: 0, kind: input, shape index: {}]
  %s1 = inlined_call_operand.hbm [shape: f32[128,128], index: 1, kind: input, shape index: {}]
  %s2 = inlined_call_operand.vmem [shape: f32[1,128], index: 2, kind: input, shape index: {}]
  %s3 = inlined_call_operand.hbm [shape: f32[8,128], index: 3, kind: output, shape index: {}]
  %s4 = sld [smem:[#allocation0]]
  $region26: #{_forward2d.1} parent=0
    _
  %s6 = ssub.s32 1, %s4
  %s7 = scalar_select 0, %s6, %s4
  $region1: #{_forward2d.1} parent=0
    #allocation2 [shape = 'u8[65536]{0}', space=vmem, size = 0x10000, scoped, tag = 'input window, operand 1, single buffered']
    #allocation3 [shape = 's32[1]{0}', space=sflag, size = 0x4, scoped, tag = 'scoped memory for _forward2d.1']
    #allocation4 [shape = 's32[1]{0}', space=sflag, size = 0x4, scoped, tag = 'scoped memory for _forward2d.1']
    #allocation5 [shape = 'u8[4096]{0}', space=vmem, size = 0x1000, scoped, tag = 'output window, operand 0, single buffered']
    %8 = vsyncpa [#allocation3], 0
    %9 = vsyncpa [#allocation4], 0
    // Predicated region
    $region2: #{_forward2d.1} parent=1 // pred_check
      _
    $region3: #{_forward2d.1} parent=1 // pred_check_branch
      %11 = sbr.rel (0) target = $region5
    $region4: #{_forward2d.1} parent=1 // pred_region
      _
    $region5: #{_forward2d.1} parent=1 // pred_fallthru
      _
    // Predicated region
    $region6: #{_forward2d.1} parent=1 // pred_check
      _
    $region7: #{_forward2d.1} parent=1 // pred_check_branch
      %13 = sbr.rel (0) target = $region9
    $region8: #{_forward2d.1} parent=1 // pred_region
      %15 = vsyncadd [#allocation3], 0
      %s16 = sshll.u32 %s1, 4
      %s17 = int_to_ptr.hbm [resolvable:$true] %s16
      %s18 = sshll.u32 [#allocation2], 4
      %s19 = int_to_ptr.vmem [resolvable:$true] %s18
      %24 = dma.hbm_to_vmem [thread:$0]  %s17, 2048, %s19, [#allocation3], 128, 128, 8
    $region9: #{_forward2d.1} parent=1 // pred_fallthru
      _
    // Predicated region
    $region10: #{_forward2d.1} parent=1 // pred_check
      _
    $region11: #{_forward2d.1} parent=1 // pred_check_branch
      %26 = sbr.rel (0) target = $region13
    $region12: #{_forward2d.1} parent=1 // pred_region
      _
    $region13: #{_forward2d.1} parent=1 // pred_fallthru
      _
    // Predicated region
    $region14: #{_forward2d.1} parent=1 // pred_check
      _
    $region15: #{_forward2d.1} parent=1 // pred_check_branch
      %28 = sbr.rel (0) target = $region17
    $region16: #{_forward2d.1} parent=1 // pred_region
      %30 = dma.done [#allocation3], 2048
    $region17: #{_forward2d.1} parent=1 // pred_fallthru
      _
    %v31 = vld [vmem:[%s0] sm:$0xff]
    %v32 = vld [vmem:[#allocation2] sm:$0xff]
    %v33 = vld [vmem:[#allocation2 + $0x8] sm:$0xff]
    %v34 = vld [vmem:[#allocation2 + $0x10] sm:$0xff]
    %v35 = vld [vmem:[#allocation2 + $0x18] sm:$0xff]
    %v36 = vld [vmem:[#allocation2 + $0x20] sm:$0xff]
    %v37 = vld [vmem:[#allocation2 + $0x28] sm:$0xff]
    %v38 = vld [vmem:[#allocation2 + $0x30] sm:$0xff]
    %v39 = vld [vmem:[#allocation2 + $0x38] sm:$0xff]
    %v40 = vld [vmem:[#allocation2 + $0x40] sm:$0xff]
    %v41 = vld [vmem:[#allocation2 + $0x48] sm:$0xff]
    %v42 = vld [vmem:[#allocation2 + $0x50] sm:$0xff]
    %v43 = vld [vmem:[#allocation2 + $0x58] sm:$0xff]
    %v44 = vld [vmem:[#allocation2 + $0x60] sm:$0xff]
    %v45 = vld [vmem:[#allocation2 + $0x68] sm:$0xff]
    %v46 = vld [vmem:[#allocation2 + $0x70] sm:$0xff]
    %v47 = vld [vmem:[#allocation2 + $0x78] sm:$0xff]
    %v48 = vld [vmem:[%s2] sm:$0x1]
    %v50 = vperm.slane %v48, 0
    %52 = vmatpush.msra.mxu0 %v47
    %53 = vmatpush.msra.mxu0 %v46
    %54 = vmatpush.msra.mxu0 %v45
    %55 = vmatpush.msra.mxu0 %v44
    %56 = vmatpush.msra.mxu0 %v43
    %57 = vmatpush.msra.mxu0 %v42
    %58 = vmatpush.msra.mxu0 %v41
    %59 = vmatpush.msra.mxu0 %v40
    %60 = vmatpush.msra.mxu0 %v39
    %61 = vmatpush.msra.mxu0 %v38
    %62 = vmatpush.msra.mxu0 %v37
    %63 = vmatpush.msra.mxu0 %v36
    %64 = vmatpush.msra.mxu0 %v35
    %65 = vmatpush.msra.mxu0 %v34
    %66 = vmatpush.msra.mxu0 %v33
    %67 = vmatpush.msra.mxu0 %v32
    %68 = vmatmul.f32.gmra.mxu0 %v31
    %v69 = vpop.f32.mrf.mxu0
    %v70 = vadd.f32 %v50, %v69
    %71 = vdwg.mxu0
    %72 = vst [vmem:[#allocation5] sm:$0xff] %v70
    // Predicated region
    $region18: #{_forward2d.1} parent=1 // pred_check
      _
    $region19: #{_forward2d.1} parent=1 // pred_check_branch
      %74 = sbr.rel (0) target = $region21
    $region20: #{_forward2d.1} parent=1 // pred_region
      %76 = vsyncadd [#allocation4], 0
      %s78 = sshll.u32 [#allocation5], 4
      %s79 = int_to_ptr.vmem [resolvable:$true] %s78
      %s80 = sshll.u32 %s3, 4
      %s81 = int_to_ptr.hbm [resolvable:$true] %s80
      %83 = dma.vmem_to_hbm [thread:$0]  %s79, 128, %s81, [#allocation4]
    $region21: #{_forward2d.1} parent=1 // pred_fallthru
      _
    // Predicated region
    $region22: #{_forward2d.1} parent=1 // pred_check
      _
    $region23: #{_forward2d.1} parent=1 // pred_check_branch
      %85 = sbr.rel (0) target = $region25
    $region24: #{_forward2d.1} parent=1 // pred_region
      %87 = dma.done [#allocation4], 128
    $region25: #{_forward2d.1} parent=1 // pred_fallthru
      _
    %88 = vsyncpa [#allocation3], 1
    %89 = vsyncpa [#allocation4], 1

</llo_original>
